<compile_context>
chip_gen: v5e
topology: v5e:2x2
jax: 0.10.0
libtpu: 0.0.40
codegen_flags: <defaults>
</compile_context>

<pallas_src>
import jax
import jax.numpy as jnp
from jax.experimental import pallas as pl
from jax.experimental.pallas import tpu as pltpu

BETA = 1.9678289474987882
VOLUME_TEMP = 0.33243242379830407
EULER_GAMMA = 0.5772156649015329


def _round_up(x, m):
    return (x + m - 1) // m * m


def word2box_kernel(clo_ref, chi_ref, xlo_ref, xhi_ref, out_ref):
    """One batch tile.

    clo_ref, chi_ref : (TB, D)    f32 VMEM. Center box low / high (pads already +/-inf).
    xlo_ref, xhi_ref : (W, TB, D) f32 VMEM. Context boxes, word-major so every
                       (TB, D) slab is a dense (8,128) tile.
    out_ref          : (8, TB)    f32 VMEM. Lane-dense score row replicated across
                       the 8 sublanes; the wrapper reads row 0.
    """
    W = xlo_ref.shape[0]
    neg_inf = jnp.float32(-jnp.inf)
    pos_inf = jnp.float32(jnp.inf)
    inv_beta = jnp.float32(1.0 / BETA)
    inv_vt = jnp.float32(1.0 / VOLUME_TEMP)

    # ---- pass 1: running extrema over the (tiny, unrolled) word axis on RAW
    # values.  max(x)/beta == max(x/beta) and -min(x)/beta == max(-x/beta), so no
    # per-word scaling multiplies here (pure VPU max/min). ----
    max_lo = clo_ref[...]
    min_hi = chi_ref[...]
    for w in range(W):
        max_lo = jnp.maximum(max_lo, xlo_ref[w])
        min_hi = jnp.minimum(min_hi, xhi_ref[w])

    # ---- pass 2: stabilized exp-sums over the word axis (VPU + EUP). ----
    s_a = jnp.exp((clo_ref[...] - max_lo) * inv_beta)
    s_b = jnp.exp((min_hi - chi_ref[...]) * inv_beta)
    for w in range(W):
        s_a = s_a + jnp.exp((xlo_ref[w] - max_lo) * inv_beta)
        s_b = s_b + jnp.exp((min_hi - xhi_ref[w]) * inv_beta)

    # z =  beta * LSE( lo/beta) = max_lo + beta*log(s_a)
    # Z = -beta * LSE(-hi/beta) = min_hi - beta*log(s_b)
    # -inf / +inf guard: an all-pad column (max_lo == -inf, min_hi == +inf) must
    # give z == -inf / Z == +inf exactly; the NaN from (inf - inf) inside exp/log
    # is computed but discarded by the select (safe on the VPU).
    z = jnp.where(max_lo == neg_inf, neg_inf, max_lo + BETA * jnp.log(s_a))
    Z = jnp.where(min_hi == pos_inf, pos_inf, min_hi - BETA * jnp.log(s_b))

    # volume: sum_d log( softplus(Z - z - 2*gamma*beta, beta=volume_temp) + 1e-23 )
    dx = Z - z - jnp.float32(2.0 * EULER_GAMMA * BETA)
    bx = jnp.float32(VOLUME_TEMP) * dx
    # torch.nn.functional.softplus(x, beta, threshold=20): linear where beta*x > 20.
    # Both branches are evaluated; min(bx, 20) keeps the exp finite on the dead branch.
    sp = jnp.where(bx > 20.0, dx,
                   jnp.log1p(jnp.exp(jnp.minimum(bx, 20.0))) * inv_vt)
    vol = jnp.sum(jnp.log(sp + 1e-23), axis=-1)           # (TB,)

    # Lane-dense store: one relayout of the TB-vector per tile instead of TB
    # masked single-lane column stores.
    out_ref[...] = jnp.broadcast_to(vol[None, :], out_ref.shape)


def word2box_forward(embeddings, context_table, center_ids, context_ids,
                     context_mask=None, *, tb=1024):
    """Word2Box.forward (stack=True branch). Returns scores of shape center_ids.shape.

    tb: batch-tile size cap (rounded to a multiple of 128). 1024 is a good default
    for v5e/v6e; use tb=2048 on v7x (double-buffered inputs ~21 MiB, inside the
    32 MiB default scoped VMEM).
    """
    # context_mask is ignored: the PyTorch forward recomputes it from context_ids == 0.
    del context_mask
    B, = center_ids.shape
    W = context_ids.shape[1]
    V, _, D = embeddings.shape

    neg_inf = jnp.float32(-jnp.inf)
    pos_inf = jnp.float32(jnp.inf)

    # ---- batch tiling: multiple of 8; lane-dense multiple of 128 when split;
    # >=2 blocks whenever the batch is large enough so v7x megacore can shard. ----
    B8 = _round_up(B, 8)
    tbe_cap = max(128, (tb // 128) * 128)
    if B8 <= 256:
        tbe, b_pad = B8, B8
    elif B8 <= 2 * tbe_cap:
        tbe = _round_up(-(-B8 // 2), 128)       # split into exactly 2 blocks
        b_pad = 2 * tbe
    else:
        tbe = tbe_cap
        b_pad = _round_up(B8, tbe)
    n_blocks = b_pad // tbe

    # ---- glue: pad the tiny int id arrays (id 0 -> all-pad row -> +inf score,
    # sliced off below), then gather lo/hi rows straight from a (2V, D) flat view
    # with fused pad masking.  No float concatenate / moveaxis / pad passes. ----
    cid = center_ids.astype(jnp.int32)
    xid = context_ids.astype(jnp.int32).T                      # (W, B): transpose ids, not floats
    if b_pad != B:
        cid = jnp.pad(cid, (0, b_pad - B))
        xid = jnp.pad(xid, ((0, 0), (0, b_pad - B)))

    emb_flat = embeddings.reshape(V * 2, D)                    # row 2v = lo, 2v+1 = hi
    ctx_flat = context_table.reshape(V * 2, D)

    c_pad = (cid == 0)[:, None]                                # (b_pad, 1)
    x_pad = (xid == 0)[:, :, None]                             # (W, b_pad, 1)

    center_lo = jnp.where(c_pad, neg_inf,
                          jnp.take(emb_flat, 2 * cid, axis=0).astype(jnp.float32))
    center_hi = jnp.where(c_pad, pos_inf,
                          jnp.take(emb_flat, 2 * cid + 1, axis=0).astype(jnp.float32))
    ctx_lo = jnp.where(x_pad, neg_inf,
                       jnp.take(ctx_flat, 2 * xid, axis=0).astype(jnp.float32))
    ctx_hi = jnp.where(x_pad, pos_inf,
                       jnp.take(ctx_flat, 2 * xid + 1, axis=0).astype(jnp.float32))

    out = pl.pallas_call(
        word2box_kernel,
        out_shape=jax.ShapeDtypeStruct((8, b_pad), jnp.float32),
        grid_spec=pltpu.PrefetchScalarGridSpec(
            num_scalar_prefetch=0,
            grid=(n_blocks,),
            in_specs=[
                pl.BlockSpec((tbe, D), lambda i: (i, 0)),
                pl.BlockSpec((tbe, D), lambda i: (i, 0)),
                pl.BlockSpec((W, tbe, D), lambda i: (0, i, 0)),
                pl.BlockSpec((W, tbe, D), lambda i: (0, i, 0)),
            ],
            out_specs=pl.BlockSpec((8, tbe), lambda i: (0, i)),
        ),
        compiler_params=pltpu.CompilerParams(dimension_semantics=("parallel",)),
    )(center_lo, center_hi, ctx_lo, ctx_hi)
    return out[0, :B]  # score.reshape(center_ids.shape)


def word2box_reference(embeddings, context_table, center_ids, context_ids):
    """Pure-JAX reference mirroring the PyTorch forward."""
    center = embeddings[center_ids].astype(jnp.float32)          # (B, 2, D)
    context = context_table[context_ids].astype(jnp.float32)     # (B, W, 2, D)
    cm = (center_ids == 0)[:, None]
    center = center.at[:, 0, :].set(jnp.where(cm, -jnp.inf, center[:, 0, :]))
    center = center.at[:, 1, :].set(jnp.where(cm, jnp.inf, center[:, 1, :]))
    xm = (context_ids == 0)[:, :, None]
    context = context.at[:, :, 0, :].set(jnp.where(xm, -jnp.inf, context[:, :, 0, :]))
    context = context.at[:, :, 1, :].set(jnp.where(xm, jnp.inf, context[:, :, 1, :]))
    lo = jnp.concatenate([center[:, None, 0, :], context[:, :, 0, :]], axis=1)
    hi = jnp.concatenate([center[:, None, 1, :], context[:, :, 1, :]], axis=1)
    z = BETA * jax.scipy.special.logsumexp(lo / BETA, axis=1)
    Z = -BETA * jax.scipy.special.logsumexp(-hi / BETA, axis=1)
    dx = Z - z - 2.0 * EULER_GAMMA * BETA
    bx = VOLUME_TEMP * dx
    sp = jnp.where(bx > 20.0, dx,
                   jnp.log1p(jnp.exp(jnp.minimum(bx, 20.0))) / VOLUME_TEMP)
    return jnp.sum(jnp.log(sp + 1e-23), axis=-1)


def init_box_table(key, vocab_size, embedding_dim):
    """Deterministic init mirroring the PyTorch __init__:
       row 0 ~ U(1e-7, 0.9-1e-7), row 1 = row 0 + 0.1."""
    low = jax.random.uniform(key, (vocab_size, embedding_dim),
                             minval=1e-7, maxval=0.9 - 1e-7, dtype=jnp.float32)
    return jnp.stack([low, low + 0.1], axis=1)   # (V, 2, D)


if __name__ == "__main__":
    V, D = 50, 128        # vocab_size, embedding_dim
    key = jax.random.PRNGKey(0)
    k_emb, k_ctx, k_cid, k_xid, k_cid2, k_xid2 = jax.random.split(key, 6)

    embeddings = init_box_table(k_emb, V, D)      # (V, 2, D)
    context_table = init_box_table(k_ctx, V, D)   # (V, 2, D)

    # --- case 1: small batch (single tile), exercises the pad-id (0) masking ---
    B, W = 8, 4
    center_ids = jax.random.randint(k_cid, (B,), 1, V, dtype=jnp.int32)
    context_ids = jax.random.randint(k_xid, (B, W), 1, V, dtype=jnp.int32)
    center_ids = center_ids.at[0].set(0)
    context_ids = context_ids.at[1, 2].set(0)
    context_mask = (context_ids != 0)  # unused (recomputed inside), passed for API parity

    score = word2box_forward(embeddings, context_table, center_ids, context_ids, context_mask)
    score = jax.block_until_ready(score)
    ref = word2box_reference(embeddings, context_table, center_ids, context_ids)
    assert score.shape == center_ids.shape
    assert jnp.allclose(score, ref, rtol=1e-5, atol=1e-4), (score, ref)

    # --- case 2: larger batch -> 2-block grid (megacore sharding path) + row padding ---
    B2, W2 = 300, 4
    center_ids2 = jax.random.randint(k_cid2, (B2,), 0, V, dtype=jnp.int32)   # includes pads
    context_ids2 = jax.random.randint(k_xid2, (B2, W2), 0, V, dtype=jnp.int32)
    score2 = word2box_forward(embeddings, context_table, center_ids2, context_ids2)
    score2 = jax.block_until_ready(score2)
    ref2 = word2box_reference(embeddings, context_table, center_ids2, context_ids2)
    assert score2.shape == center_ids2.shape
    assert jnp.allclose(score2, ref2, rtol=1e-5, atol=1e-4), (score2, ref2)

    print("KERNEL_OK")
</pallas_src>

<mosaic_0001>
module attributes {stable_mosaic.version = 11 : i64} {
  func.func @word2box_kernel(%arg0: i32, %arg1: memref<8x128xf32, #tpu.memory_space<vmem>>, %arg2: memref<8x128xf32, #tpu.memory_space<vmem>>, %arg3: memref<4x8x128xf32, #tpu.memory_space<vmem>>, %arg4: memref<4x8x128xf32, #tpu.memory_space<vmem>>, %arg5: memref<8x8xf32, #tpu.memory_space<vmem>>) attributes {dimension_semantics = [#tpu.dimension_semantics<parallel>], iteration_bounds = array<i64: 1>, scalar_prefetch = 0 : i64, scratch_operands = 0 : i64, tpu.core_type = #tpu.core_type<tc>, window_params = [{transform_indices = @transform_0, window_bounds = array<i64: 8, 128>}, {transform_indices = @transform_1, window_bounds = array<i64: 8, 128>}, {transform_indices = @transform_2, window_bounds = array<i64: 4, 8, 128>}, {transform_indices = @transform_3, window_bounds = array<i64: 4, 8, 128>}, {transform_indices = @transform_4, window_bounds = array<i64: 8, 8>}]} {
    %c0 = arith.constant 0 : index
    %c0_0 = arith.constant 0 : index
    %0 = vector.load %arg1[%c0, %c0_0] : memref<8x128xf32, #tpu.memory_space<vmem>>, vector<8x128xf32>
    %c0_1 = arith.constant 0 : index
    %c0_2 = arith.constant 0 : index
    %1 = vector.load %arg2[%c0_1, %c0_2] : memref<8x128xf32, #tpu.memory_space<vmem>>, vector<8x128xf32>
    %c0_3 = arith.constant 0 : index
    %c0_4 = arith.constant 0 : index
    %c0_5 = arith.constant 0 : index
    %2 = vector.load %arg3[%c0_3, %c0_4, %c0_5] : memref<4x8x128xf32, #tpu.memory_space<vmem>>, vector<1x8x128xf32>
    %3 = vector.shape_cast %2 : vector<1x8x128xf32> to vector<8x128xf32>
    %4 = arith.maximumf %0, %3 : vector<8x128xf32>
    %c0_6 = arith.constant 0 : index
    %c0_7 = arith.constant 0 : index
    %c0_8 = arith.constant 0 : index
    %5 = vector.load %arg4[%c0_6, %c0_7, %c0_8] : memref<4x8x128xf32, #tpu.memory_space<vmem>>, vector<1x8x128xf32>
    %6 = vector.shape_cast %5 : vector<1x8x128xf32> to vector<8x128xf32>
    %7 = arith.minimumf %1, %6 : vector<8x128xf32>
    %c1 = arith.constant 1 : index
    %c0_9 = arith.constant 0 : index
    %c0_10 = arith.constant 0 : index
    %8 = vector.load %arg3[%c1, %c0_9, %c0_10] : memref<4x8x128xf32, #tpu.memory_space<vmem>>, vector<1x8x128xf32>
    %9 = vector.shape_cast %8 : vector<1x8x128xf32> to vector<8x128xf32>
    %10 = arith.maximumf %4, %9 : vector<8x128xf32>
    %c1_11 = arith.constant 1 : index
    %c0_12 = arith.constant 0 : index
    %c0_13 = arith.constant 0 : index
    %11 = vector.load %arg4[%c1_11, %c0_12, %c0_13] : memref<4x8x128xf32, #tpu.memory_space<vmem>>, vector<1x8x128xf32>
    %12 = vector.shape_cast %11 : vector<1x8x128xf32> to vector<8x128xf32>
    %13 = arith.minimumf %7, %12 : vector<8x128xf32>
    %c2 = arith.constant 2 : index
    %c0_14 = arith.constant 0 : index
    %c0_15 = arith.constant 0 : index
    %14 = vector.load %arg3[%c2, %c0_14, %c0_15] : memref<4x8x128xf32, #tpu.memory_space<vmem>>, vector<1x8x128xf32>
    %15 = vector.shape_cast %14 : vector<1x8x128xf32> to vector<8x128xf32>
    %16 = arith.maximumf %10, %15 : vector<8x128xf32>
    %c2_16 = arith.constant 2 : index
    %c0_17 = arith.constant 0 : index
    %c0_18 = arith.constant 0 : index
    %17 = vector.load %arg4[%c2_16, %c0_17, %c0_18] : memref<4x8x128xf32, #tpu.memory_space<vmem>>, vector<1x8x128xf32>
    %18 = vector.shape_cast %17 : vector<1x8x128xf32> to vector<8x128xf32>
    %19 = arith.minimumf %13, %18 : vector<8x128xf32>
    %c3 = arith.constant 3 : index
    %c0_19 = arith.constant 0 : index
    %c0_20 = arith.constant 0 : index
    %20 = vector.load %arg3[%c3, %c0_19, %c0_20] : memref<4x8x128xf32, #tpu.memory_space<vmem>>, vector<1x8x128xf32>
    %21 = vector.shape_cast %20 : vector<1x8x128xf32> to vector<8x128xf32>
    %22 = arith.maximumf %16, %21 : vector<8x128xf32>
    %c3_21 = arith.constant 3 : index
    %c0_22 = arith.constant 0 : index
    %c0_23 = arith.constant 0 : index
    %23 = vector.load %arg4[%c3_21, %c0_22, %c0_23] : memref<4x8x128xf32, #tpu.memory_space<vmem>>, vector<1x8x128xf32>
    %24 = vector.shape_cast %23 : vector<1x8x128xf32> to vector<8x128xf32>
    %25 = arith.minimumf %19, %24 : vector<8x128xf32>
    %c0_24 = arith.constant 0 : index
    %c0_25 = arith.constant 0 : index
    %26 = vector.load %arg1[%c0_24, %c0_25] : memref<8x128xf32, #tpu.memory_space<vmem>>, vector<8x128xf32>
    %27 = arith.subf %26, %22 : vector<8x128xf32>
    %cst = arith.constant 0.508174241 : f32
    %28 = vector.broadcast %cst : f32 to vector<8x128xf32>
    %29 = arith.mulf %27, %28 : vector<8x128xf32>
    %30 = math.exp %29 : vector<8x128xf32>
    %c0_26 = arith.constant 0 : index
    %c0_27 = arith.constant 0 : index
    %31 = vector.load %arg2[%c0_26, %c0_27] : memref<8x128xf32, #tpu.memory_space<vmem>>, vector<8x128xf32>
    %32 = arith.subf %25, %31 : vector<8x128xf32>
    %cst_28 = arith.constant 0.508174241 : f32
    %33 = vector.broadcast %cst_28 : f32 to vector<8x128xf32>
    %34 = arith.mulf %32, %33 : vector<8x128xf32>
    %35 = math.exp %34 : vector<8x128xf32>
    %c0_29 = arith.constant 0 : index
    %c0_30 = arith.constant 0 : index
    %c0_31 = arith.constant 0 : index
    %36 = vector.load %arg3[%c0_29, %c0_30, %c0_31] : memref<4x8x128xf32, #tpu.memory_space<vmem>>, vector<1x8x128xf32>
    %37 = vector.shape_cast %36 : vector<1x8x128xf32> to vector<8x128xf32>
    %38 = arith.subf %37, %22 : vector<8x128xf32>
    %cst_32 = arith.constant 0.508174241 : f32
    %39 = vector.broadcast %cst_32 : f32 to vector<8x128xf32>
    %40 = arith.mulf %38, %39 : vector<8x128xf32>
    %41 = math.exp %40 : vector<8x128xf32>
    %42 = arith.addf %30, %41 : vector<8x128xf32>
    %c0_33 = arith.constant 0 : index
    %c0_34 = arith.constant 0 : index
    %c0_35 = arith.constant 0 : index
    %43 = vector.load %arg4[%c0_33, %c0_34, %c0_35] : memref<4x8x128xf32, #tpu.memory_space<vmem>>, vector<1x8x128xf32>
    %44 = vector.shape_cast %43 : vector<1x8x128xf32> to vector<8x128xf32>
    %45 = arith.subf %25, %44 : vector<8x128xf32>
    %cst_36 = arith.constant 0.508174241 : f32
    %46 = vector.broadcast %cst_36 : f32 to vector<8x128xf32>
    %47 = arith.mulf %45, %46 : vector<8x128xf32>
    %48 = math.exp %47 : vector<8x128xf32>
    %49 = arith.addf %35, %48 : vector<8x128xf32>
    %c1_37 = arith.constant 1 : index
    %c0_38 = arith.constant 0 : index
    %c0_39 = arith.constant 0 : index
    %50 = vector.load %arg3[%c1_37, %c0_38, %c0_39] : memref<4x8x128xf32, #tpu.memory_space<vmem>>, vector<1x8x128xf32>
    %51 = vector.shape_cast %50 : vector<1x8x128xf32> to vector<8x128xf32>
    %52 = arith.subf %51, %22 : vector<8x128xf32>
    %cst_40 = arith.constant 0.508174241 : f32
    %53 = vector.broadcast %cst_40 : f32 to vector<8x128xf32>
    %54 = arith.mulf %52, %53 : vector<8x128xf32>
    %55 = math.exp %54 : vector<8x128xf32>
    %56 = arith.addf %42, %55 : vector<8x128xf32>
    %c1_41 = arith.constant 1 : index
    %c0_42 = arith.constant 0 : index
    %c0_43 = arith.constant 0 : index
    %57 = vector.load %arg4[%c1_41, %c0_42, %c0_43] : memref<4x8x128xf32, #tpu.memory_space<vmem>>, vector<1x8x128xf32>
    %58 = vector.shape_cast %57 : vector<1x8x128xf32> to vector<8x128xf32>
    %59 = arith.subf %25, %58 : vector<8x128xf32>
    %cst_44 = arith.constant 0.508174241 : f32
    %60 = vector.broadcast %cst_44 : f32 to vector<8x128xf32>
    %61 = arith.mulf %59, %60 : vector<8x128xf32>
    %62 = math.exp %61 : vector<8x128xf32>
    %63 = arith.addf %49, %62 : vector<8x128xf32>
    %c2_45 = arith.constant 2 : index
    %c0_46 = arith.constant 0 : index
    %c0_47 = arith.constant 0 : index
    %64 = vector.load %arg3[%c2_45, %c0_46, %c0_47] : memref<4x8x128xf32, #tpu.memory_space<vmem>>, vector<1x8x128xf32>
    %65 = vector.shape_cast %64 : vector<1x8x128xf32> to vector<8x128xf32>
    %66 = arith.subf %65, %22 : vector<8x128xf32>
    %cst_48 = arith.constant 0.508174241 : f32
    %67 = vector.broadcast %cst_48 : f32 to vector<8x128xf32>
    %68 = arith.mulf %66, %67 : vector<8x128xf32>
    %69 = math.exp %68 : vector<8x128xf32>
    %70 = arith.addf %56, %69 : vector<8x128xf32>
    %c2_49 = arith.constant 2 : index
    %c0_50 = arith.constant 0 : index
    %c0_51 = arith.constant 0 : index
    %71 = vector.load %arg4[%c2_49, %c0_50, %c0_51] : memref<4x8x128xf32, #tpu.memory_space<vmem>>, vector<1x8x128xf32>
    %72 = vector.shape_cast %71 : vector<1x8x128xf32> to vector<8x128xf32>
    %73 = arith.subf %25, %72 : vector<8x128xf32>
    %cst_52 = arith.constant 0.508174241 : f32
    %74 = vector.broadcast %cst_52 : f32 to vector<8x128xf32>
    %75 = arith.mulf %73, %74 : vector<8x128xf32>
    %76 = math.exp %75 : vector<8x128xf32>
    %77 = arith.addf %63, %76 : vector<8x128xf32>
    %c3_53 = arith.constant 3 : index
    %c0_54 = arith.constant 0 : index
    %c0_55 = arith.constant 0 : index
    %78 = vector.load %arg3[%c3_53, %c0_54, %c0_55] : memref<4x8x128xf32, #tpu.memory_space<vmem>>, vector<1x8x128xf32>
    %79 = vector.shape_cast %78 : vector<1x8x128xf32> to vector<8x128xf32>
    %80 = arith.subf %79, %22 : vector<8x128xf32>
    %cst_56 = arith.constant 0.508174241 : f32
    %81 = vector.broadcast %cst_56 : f32 to vector<8x128xf32>
    %82 = arith.mulf %80, %81 : vector<8x128xf32>
    %83 = math.exp %82 : vector<8x128xf32>
    %84 = arith.addf %70, %83 : vector<8x128xf32>
    %c3_57 = arith.constant 3 : index
    %c0_58 = arith.constant 0 : index
    %c0_59 = arith.constant 0 : index
    %85 = vector.load %arg4[%c3_57, %c0_58, %c0_59] : memref<4x8x128xf32, #tpu.memory_space<vmem>>, vector<1x8x128xf32>
    %86 = vector.shape_cast %85 : vector<1x8x128xf32> to vector<8x128xf32>
    %87 = arith.subf %25, %86 : vector<8x128xf32>
    %cst_60 = arith.constant 0.508174241 : f32
    %88 = vector.broadcast %cst_60 : f32 to vector<8x128xf32>
    %89 = arith.mulf %87, %88 : vector<8x128xf32>
    %90 = math.exp %89 : vector<8x128xf32>
    %91 = arith.addf %77, %90 : vector<8x128xf32>
    %cst_61 = arith.constant 0xFF800000 : f32
    %92 = vector.broadcast %cst_61 : f32 to vector<8x128xf32>
    %93 = arith.cmpf oeq, %22, %92 : vector<8x128xf32>
    %94 = math.log %84 : vector<8x128xf32>
    %cst_62 = arith.constant 1.96782899 : f32
    %95 = vector.broadcast %cst_62 : f32 to vector<8x128xf32>
    %96 = arith.mulf %95, %94 : vector<8x128xf32>
    %97 = arith.addf %22, %96 : vector<8x128xf32>
    %cst_63 = arith.constant 0xFF800000 : f32
    %98 = vector.broadcast %cst_63 : f32 to vector<8x128xf32>
    %99 = arith.select %93, %98, %97 : vector<8x128xi1>, vector<8x128xf32>
    %cst_64 = arith.constant 0x7F800000 : f32
    %100 = vector.broadcast %cst_64 : f32 to vector<8x128xf32>
    %101 = arith.cmpf oeq, %25, %100 : vector<8x128xf32>
    %102 = math.log %91 : vector<8x128xf32>
    %cst_65 = arith.constant 1.96782899 : f32
    %103 = vector.broadcast %cst_65 : f32 to vector<8x128xf32>
    %104 = arith.mulf %103, %102 : vector<8x128xf32>
    %105 = arith.subf %25, %104 : vector<8x128xf32>
    %cst_66 = arith.constant 0x7F800000 : f32
    %106 = vector.broadcast %cst_66 : f32 to vector<8x128xf32>
    %107 = arith.select %101, %106, %105 : vector<8x128xi1>, vector<8x128xf32>
    %108 = arith.subf %107, %99 : vector<8x128xf32>
    %cst_67 = arith.constant 2.27172327 : f32
    %109 = vector.broadcast %cst_67 : f32 to vector<8x128xf32>
    %110 = arith.subf %108, %109 : vector<8x128xf32>
    %cst_68 = arith.constant 0.332432419 : f32
    %111 = vector.broadcast %cst_68 : f32 to vector<8x128xf32>
    %112 = arith.mulf %111, %110 : vector<8x128xf32>
    %cst_69 = arith.constant 2.000000e+01 : f32
    %113 = vector.broadcast %cst_69 : f32 to vector<8x128xf32>
    %114 = arith.cmpf ogt, %112, %113 : vector<8x128xf32>
    %cst_70 = arith.constant 2.000000e+01 : f32
    %115 = vector.broadcast %cst_70 : f32 to vector<8x128xf32>
    %116 = arith.minimumf %112, %115 : vector<8x128xf32>
    %117 = math.exp %116 : vector<8x128xf32>
    %118 = math.log1p %117 : vector<8x128xf32>
    %cst_71 = arith.constant 3.008130e+00 : f32
    %119 = vector.broadcast %cst_71 : f32 to vector<8x128xf32>
    %120 = arith.mulf %118, %119 : vector<8x128xf32>
    %121 = arith.select %114, %110, %120 : vector<8x128xi1>, vector<8x128xf32>
    %cst_72 = arith.constant 9.99999999E-24 : f32
    %122 = vector.broadcast %cst_72 : f32 to vector<8x128xf32>
    %123 = arith.addf %121, %122 : vector<8x128xf32>
    %124 = math.log %123 : vector<8x128xf32>
    %cst_73 = arith.constant dense<0.000000e+00> : vector<8xf32>
    %125 = vector.multi_reduction <add>, %124, %cst_73 [1] : vector<8x128xf32> to vector<8xf32>
    %126 = vector.shape_cast %125 : vector<8xf32> to vector<1x8xf32>
    %127 = vector.shape_cast %126 : vector<1x8xf32> to vector<1x8xf32>
    %128 = vector.broadcast %127 : vector<1x8xf32> to vector<8x8xf32>
    %c0_74 = arith.constant 0 : index
    %c0_75 = arith.constant 0 : index
    %129 = vector.load %arg5[%c0_74, %c0_75] : memref<8x8xf32, #tpu.memory_space<vmem>>, vector<8x8xf32>
    tpu.vector_store %arg5[%c0_74, %c0_75], %128 {strides = array<i32>} : memref<8x8xf32, #tpu.memory_space<vmem>>, vector<8x8xf32>,
    return
  }
  func.func @transform_0(%arg0: i32) -> (i32, i32) {
    %c0_i32 = arith.constant 0 : i32
    %c0_i32_0 = arith.constant 0 : i32
    return %arg0, %c0_i32 : i32, i32
  }
  func.func @transform_1(%arg0: i32) -> (i32, i32) {
    %c0_i32 = arith.constant 0 : i32
    %c0_i32_0 = arith.constant 0 : i32
    return %arg0, %c0_i32 : i32, i32
  }
  func.func @transform_2(%arg0: i32) -> (i32, i32, i32) {
    %c0_i32 = arith.constant 0 : i32
    %c0_i32_0 = arith.constant 0 : i32
    %c0_i32_1 = arith.constant 0 : i32
    return %c0_i32, %arg0, %c0_i32_0 : i32, i32, i32
  }
  func.func @transform_3(%arg0: i32) -> (i32, i32, i32) {
    %c0_i32 = arith.constant 0 : i32
    %c0_i32_0 = arith.constant 0 : i32
    %c0_i32_1 = arith.constant 0 : i32
    return %c0_i32, %arg0, %c0_i32_0 : i32, i32, i32
  }
  func.func @transform_4(%arg0: i32) -> (i32, i32) {
    %c0_i32 = arith.constant 0 : i32
    %c0_i32_0 = arith.constant 0 : i32
    return %c0_i32, %arg0 : i32, i32
  }
}

</mosaic_0001>

<llo_original>
// kernel: tpu_custom_call.1
$region0: #{tpu_custom_call.1}
  #allocation0 [shape = 'u32[]', space=smem, size = 0x4, offset = 0x4, fixed_abs, tag = 'smem constant byte address 0x4 - core index']
  #allocation1 [shape = 'u32[72,128]{1,0:T(1,128)}', space=vmem, size = 0x9000, scoped, tag = 'internal scratch']
  %s0 = inlined_call_operand.hbm [shape: f32[8,128], index: 0, kind: input, shape index: {}]
  %s1 = inlined_call_operand.hbm [shape: f32[8,128], index: 1, kind: input, shape index: {}]
  %s2 = inlined_call_operand.hbm [shape: f32[4,8,128], index: 2, kind: input, shape index: {}]
  %s3 = inlined_call_operand.hbm [shape: f32[4,8,128], index: 3, kind: input, shape index: {}]
  %s4 = inlined_call_operand.hbm [shape: f32[8,8], index: 4, kind: output, shape index: {}]
  %s5 = sld [smem:[#allocation0]]
  $region42: #{tpu_custom_call.1} parent=0
    _
  %s7 = ssub.s32 1, %s5
  %s8 = scalar_select 0, %s7, %s5
  $region1: #{tpu_custom_call.1} parent=0
    #allocation2 [shape = 'u8[4096]{0}', space=vmem, size = 0x1000, scoped, tag = 'input window, operand 0, single buffered']
    #allocation3 [shape = 's32[1]{0}', space=sflag, size = 0x4, scoped, tag = 'scoped memory for tpu_custom_call.1']
    #allocation4 [shape = 's32[1]{0}', space=sflag, size = 0x4, scoped, tag = 'scoped memory for tpu_custom_call.1']
    #allocation5 [shape = 'u8[4096]{0}', space=vmem, size = 0x1000, scoped, tag = 'input window, operand 1, single buffered']
    #allocation6 [shape = 's32[1]{0}', space=sflag, size = 0x4, scoped, tag = 'scoped memory for tpu_custom_call.1']
    #allocation7 [shape = 'u8[16384]{0}', space=vmem, size = 0x4000, scoped, tag = 'input window, operand 2, single buffered']
    #allocation8 [shape = 'u8[16384]{0}', space=vmem, size = 0x4000, scoped, tag = 'input window, operand 3, single buffered']
    #allocation9 [shape = 's32[1]{0}', space=sflag, size = 0x4, scoped, tag = 'scoped memory for tpu_custom_call.1']
    #allocation10 [shape = 'u8[4096]{0}', space=vmem, size = 0x1000, scoped, tag = 'output window, operand 0, single buffered']
    %9 = vsyncpa [#allocation3], 0
    %10 = vsyncpa [#allocation6], 0
    %11 = vsyncpa [#allocation9], 0
    %12 = vsyncpa [#allocation4], 0
    // Predicated region
    $region2: #{tpu_custom_call.1} parent=1 // pred_check
      _
    $region3: #{tpu_custom_call.1} parent=1 // pred_check_branch
      %14 = sbr.rel (0) target = $region5
    $region4: #{tpu_custom_call.1} parent=1 // pred_region
      %16 = vsyncadd [#allocation3], 0
      %s18 = sshll.u32 %s0, 4
      %s19 = int_to_ptr.hbm [resolvable:$true] %s18
      %s20 = sshll.u32 [#allocation2], 4
      %s21 = int_to_ptr.vmem [resolvable:$true] %s20
      %23 = dma.hbm_to_vmem [thread:$0]  %s19, 128, %s21, [#allocation3]
    $region5: #{tpu_custom_call.1} parent=1 // pred_fallthru
      _
    // Predicated region
    $region6: #{tpu_custom_call.1} parent=1 // pred_check
      _
    $region7: #{tpu_custom_call.1} parent=1 // pred_check_branch
      %25 = sbr.rel (0) target = $region9
    $region8: #{tpu_custom_call.1} parent=1 // pred_region
      %27 = vsyncadd [#allocation6], 0
      %s29 = sshll.u32 %s1, 4
      %s30 = int_to_ptr.hbm [resolvable:$true] %s29
      %s31 = sshll.u32 [#allocation5], 4
      %s32 = int_to_ptr.vmem [resolvable:$true] %s31
      %34 = dma.hbm_to_vmem [thread:$0]  %s30, 128, %s32, [#allocation6]
    $region9: #{tpu_custom_call.1} parent=1 // pred_fallthru
      _
    // Predicated region
    $region10: #{tpu_custom_call.1} parent=1 // pred_check
      _
    $region11: #{tpu_custom_call.1} parent=1 // pred_check_branch
      %36 = sbr.rel (0) target = $region13
    $region12: #{tpu_custom_call.1} parent=1 // pred_region
      %38 = vsyncadd [#allocation6], 0
      %s39 = sshll.u32 %s2, 4
      %s40 = int_to_ptr.hbm [resolvable:$true] %s39
      %s41 = sshll.u32 [#allocation7], 4
      %s42 = int_to_ptr.vmem [resolvable:$true] %s41
      %47 = dma.hbm_to_vmem [thread:$0]  %s40, 512, %s42, [#allocation6], 128, 128, 8
    $region13: #{tpu_custom_call.1} parent=1 // pred_fallthru
      _
    // Predicated region
    $region14: #{tpu_custom_call.1} parent=1 // pred_check
      _
    $region15: #{tpu_custom_call.1} parent=1 // pred_check_branch
      %49 = sbr.rel (0) target = $region17
    $region16: #{tpu_custom_call.1} parent=1 // pred_region
      %51 = vsyncadd [#allocation9], 0
      %s52 = sshll.u32 %s3, 4
      %s53 = int_to_ptr.hbm [resolvable:$true] %s52
      %s54 = sshll.u32 [#allocation8], 4
      %s55 = int_to_ptr.vmem [resolvable:$true] %s54
      %60 = dma.hbm_to_vmem [thread:$0]  %s53, 512, %s55, [#allocation9], 128, 128, 8
    $region17: #{tpu_custom_call.1} parent=1 // pred_fallthru
      _
    // Predicated region
    $region18: #{tpu_custom_call.1} parent=1 // pred_check
      _
    $region19: #{tpu_custom_call.1} parent=1 // pred_check_branch
      %62 = sbr.rel (0) target = $region21
    $region20: #{tpu_custom_call.1} parent=1 // pred_region
      %64 = dma.done [#allocation3], 128
    $region21: #{tpu_custom_call.1} parent=1 // pred_fallthru
      _
    // Predicated region
    $region22: #{tpu_custom_call.1} parent=1 // pred_check
      _
    $region23: #{tpu_custom_call.1} parent=1 // pred_check_branch
      %66 = sbr.rel (0) target = $region25
    $region24: #{tpu_custom_call.1} parent=1 // pred_region
      %68 = dma.done [#allocation6], 128
    $region25: #{tpu_custom_call.1} parent=1 // pred_fallthru
      _
    // Predicated region
    $region26: #{tpu_custom_call.1} parent=1 // pred_check
      _
    $region27: #{tpu_custom_call.1} parent=1 // pred_check_branch
      %70 = sbr.rel (0) target = $region29
    $region28: #{tpu_custom_call.1} parent=1 // pred_region
      %72 = dma.done [#allocation6], 512
    $region29: #{tpu_custom_call.1} parent=1 // pred_fallthru
      _
    // Predicated region
    $region30: #{tpu_custom_call.1} parent=1 // pred_check
      _
    $region31: #{tpu_custom_call.1} parent=1 // pred_check_branch
      %74 = sbr.rel (0) target = $region33
    $region32: #{tpu_custom_call.1} parent=1 // pred_region
      %76 = dma.done [#allocation9], 512
    $region33: #{tpu_custom_call.1} parent=1 // pred_fallthru
      _
    %v77 = vld [vmem:[#allocation2] sm:$0xff]
    %v78 = vld [vmem:[#allocation5] sm:$0xff]
    %v79 = vld [vmem:[#allocation7] sm:$0xff]
    %v80 = vmax.f32 %v77, %v79
    %v81 = vld [vmem:[#allocation8] sm:$0xff]
    %v82 = vmin.f32 %v78, %v81
    %s83 = scalar_lea.vmem [#allocation7], 8
    %v84 = vld [vmem:[%s83] sm:$0xff]
    %v85 = vmax.f32 %v80, %v84
    %s86 = scalar_lea.vmem [#allocation8], 8
    %v87 = vld [vmem:[%s86] sm:$0xff]
    %v88 = vmin.f32 %v82, %v87
    %s89 = scalar_lea.vmem [#allocation7], 16
    %v90 = vld [vmem:[%s89] sm:$0xff]
    %v91 = vmax.f32 %v85, %v90
    %s92 = scalar_lea.vmem [#allocation8], 16
    %v93 = vld [vmem:[%s92] sm:$0xff]
    %v94 = vmin.f32 %v88, %v93
    %s95 = scalar_lea.vmem [#allocation7], 24
    %v96 = vld [vmem:[%s95] sm:$0xff]
    %v97 = vmax.f32 %v91, %v96
    %s98 = scalar_lea.vmem [#allocation8], 24
    %v99 = vld [vmem:[%s98] sm:$0xff]
    %v100 = vmin.f32 %v94, %v99
    %v101 = vsub.f32 %v77, %v97
    %v102 = vmul.f32 %v101, 0.50817424
    %v103 = vmul.f32 %v102, 1.442695
    %v104 = vpow.pop %v103
    %v105 = vsub.f32 %v100, %v78
    %v106 = vmul.f32 %v105, 0.50817424
    %v107 = vmul.f32 %v106, 1.442695
    %v108 = vpow.pop %v107
    %v109 = vsub.f32 %v79, %v97
    %v110 = vmul.f32 %v109, 0.50817424
    %v111 = vmul.f32 %v110, 1.442695
    %v112 = vpow.pop %v111
    %v113 = vadd.f32 %v104, %v112
    %v114 = vsub.f32 %v100, %v81
    %v115 = vmul.f32 %v114, 0.50817424
    %v116 = vmul.f32 %v115, 1.442695
    %v117 = vpow.pop %v116
    %v118 = vadd.f32 %v108, %v117
    %v119 = vsub.f32 %v84, %v97
    %v120 = vmul.f32 %v119, 0.50817424
    %v121 = vmul.f32 %v120, 1.442695
    %v122 = vpow.pop %v121
    %v123 = vadd.f32 %v113, %v122
    %v124 = vsub.f32 %v100, %v87
    %v125 = vmul.f32 %v124, 0.50817424
    %v126 = vmul.f32 %v125, 1.442695
    %v127 = vpow.pop %v126
    %v128 = vadd.f32 %v118, %v127
    %v129 = vsub.f32 %v90, %v97
    %v130 = vmul.f32 %v129, 0.50817424
    %v131 = vmul.f32 %v130, 1.442695
    %v132 = vpow.pop %v131
    %v133 = vadd.f32 %v123, %v132
    %v134 = vsub.f32 %v100, %v93
    %v135 = vmul.f32 %v134, 0.50817424
    %v136 = vmul.f32 %v135, 1.442695
    %v137 = vpow.pop %v136
    %v138 = vadd.f32 %v128, %v137
    %v139 = vsub.f32 %v96, %v97
    %v140 = vmul.f32 %v139, 0.50817424
    %v141 = vmul.f32 %v140, 1.442695
    %v142 = vpow.pop %v141
    %v143 = vadd.f32 %v133, %v142
    %v144 = vsub.f32 %v100, %v99
    %v145 = vmul.f32 %v144, 0.50817424
    %v146 = vmul.f32 %v145, 1.442695
    %v147 = vpow.pop %v146
    %v148 = vadd.f32 %v138, %v147
    %vm149 = vcmp.eq.f32.partialorder %v97, -inf
    %v150 = vlog2.pop %v143
    %v151 = vmul.f32 %v150, 0.6931472
    %v152 = vmul.f32 %v151, 1.967829
    %v153 = vadd.f32 %v97, %v152
    %v154 = vsel %vm149, -inf, %v153
    %vm155 = vcmp.eq.f32.partialorder %v100, inf
    %v156 = vlog2.pop %v148
    %v157 = vmul.f32 %v156, 0.6931472
    %v158 = vmul.f32 %v157, 1.967829
    %v159 = vsub.f32 %v100, %v158
    %v160 = vsel %vm155, inf, %v159
    %v161 = vsub.f32 %v160, %v154
    %v162 = vsub.f32 %v161, 2.2717233
    %v163 = vmul.f32 %v162, 0.33243242
    %vm164 = vcmp.gt.f32.partialorder %v163, 20.0
    %v165 = vmin.f32 %v163, 20.0
    %v166 = vmul.f32 %v165, 1.442695
    %v167 = vpow.pop %v166
    %v168 = vadd.f32 %v167, 1.0
    %v169 = vlog2.pop %v168
    %v170 = vmul.f32 %v169, 0.6931472
    %v171 = vmul.f32 -0.5, %v167
    %v172 = vadd.f32 %v171, 1.0
    %v173 = vmul.f32 %v172, %v167
    %v174 = vand.u32 2147483647, %v167
    %vm175 = vcmp.lt.f32.partialorder %v174, 0.0004427343
    %v176 = vsel %vm175, %v173, %v170
    %v177 = vmul.f32 %v176, 3.00813
    %v178 = vsel %vm164, %v162, %v177
    %v179 = vadd.f32 %v178, 1e-23
    %v180 = vlog2.pop %v179
    %v181 = vmul.f32 %v180, 0.6931472
    %182 = vadd.xlane.f32.xlu0 %v181
    %v183 = vpop.xlane.xlu0 %182
    %v185 = vlaneseq
    %v186 = vand.u32 %v185, 127
    %v187 = vperm.slane %v183, %v186
    %vm188 = vcmask 1042434
    %v189 = vsel %vm188, %v187, %v187
    %vm190 = vcmask 1043459
    %v191 = vsel %vm190, %v187, %v189
    %vm192 = vcmask 1044484
    %v193 = vsel %vm192, %v187, %v191
    %vm194 = vcmask 1045509
    %v195 = vsel %vm194, %v187, %v193
    %vm196 = vcmask 1046534
    %v197 = vsel %vm196, %v187, %v195
    %vm198 = vcmask 1047559
    %v199 = vsel %vm198, %v187, %v197
    %vm201 = vcmask 64512
    %202 = vst.msk [vmem:[#allocation10] sm:$0xff] %vm201, %v199
    // Predicated region
    $region34: #{tpu_custom_call.1} parent=1 // pred_check
      _
    $region35: #{tpu_custom_call.1} parent=1 // pred_check_branch
      %204 = sbr.rel (0) target = $region37
    $region36: #{tpu_custom_call.1} parent=1 // pred_region
      %206 = vsyncadd [#allocation4], 0
      %s208 = sshll.u32 [#allocation10], 4
      %s209 = int_to_ptr.vmem [resolvable:$true] %s208
      %s210 = sshll.u32 %s4, 4
      %s211 = int_to_ptr.hbm [resolvable:$true] %s210
      %213 = dma.vmem_to_hbm [thread:$0]  %s209, 128, %s211, [#allocation4]
    $region37: #{tpu_custom_call.1} parent=1 // pred_fallthru
      _
    // Predicated region
    $region38: #{tpu_custom_call.1} parent=1 // pred_check
      _
    $region39: #{tpu_custom_call.1} parent=1 // pred_check_branch
      %215 = sbr.rel (0) target = $region41
    $region40: #{tpu_custom_call.1} parent=1 // pred_region
      %217 = dma.done [#allocation4], 128
    $region41: #{tpu_custom_call.1} parent=1 // pred_fallthru
      _
    %218 = vsyncpa [#allocation3], 1
    %219 = vsyncpa [#allocation6], 1
    %220 = vsyncpa [#allocation9], 1
    %221 = vsyncpa [#allocation4], 1

</llo_original>
